<compile_context>
chip_gen: v7x
topology: tpu7x:2x2x1
jax: 0.10.0
libtpu: 0.0.40
codegen_flags: <defaults>
</compile_context>

<pallas_src>
import jax
import jax.numpy as jnp
from jax import lax
from jax.experimental import pallas as pl
from jax.experimental.pallas import tpu as pltpu


# ---------------------------------------------------------------------------
# Per-generation tuning.
# ---------------------------------------------------------------------------
def _device_kind():
    try:
        return jax.devices()[0].device_kind.lower()
    except Exception:  # pragma: no cover - defensive only
        return ""


_KIND = _device_kind()
_IS_V7 = "v7" in _KIND
_MULTI_CORE = _IS_V7 or ("v4" in _KIND) or ("v5p" in _KIND)

# Per-input block byte budget, planned in f32 (conservative for bf16 inputs).
_BLOCK_BYTES = (3 << 20) if _IS_V7 else (4 << 20)
# v7x has only 64 MiB VMEM per TensorCore; v5e/v6e have 128 MiB.
_VMEM_LIMIT = (44 << 20) if _IS_V7 else (64 << 20)
_N_OUTER_TARGET = 2 if _MULTI_CORE else 1


def _row_tile_for(width, n_rows):
    """Rows per block: byte-budgeted, multiple of 8 unless it equals the full row count."""
    budget = max(8, ((_BLOCK_BYTES // (4 * max(width, 1))) // 8) * 8)
    tile = min(budget, n_rows)
    if tile < n_rows:
        tile = max(8, (tile // 8) * 8)
    return tile


def _grid_for(n_rows, row_tile):
    """(n_outer, n_inner): outer 'parallel' chunks only on multi-TC parts, never OOB blocks."""
    n_blocks = -(-n_rows // row_tile)
    if (_N_OUTER_TARGET > 1 and n_blocks % _N_OUTER_TARGET == 0
            and n_blocks >= 2 * _N_OUTER_TARGET):
        n_outer = _N_OUTER_TARGET
    else:
        n_outer = 1
    return n_outer, n_blocks // n_outer


def _lane_dense_2d(x):
    """Flatten a contiguous tensor to a lane-dense (rows, width) view (no copy)."""
    total = x.size
    for w in (4096, 2048, 1024, 512, 256, 128):
        if total % w == 0:
            return x.reshape(total // w, w)
    return x.reshape(-1, x.shape[-1])


def _partial_sums(out, n_outer):
    # Each outer chunk broadcast-writes its partial sum across its (8,128) output block.
    return out.reshape(n_outer, 8, 128)[:, 0, 0].sum()


# ---------------------------------------------------------------------------
# Kernel 1: logits KL divergence  sum_rows KL( softmax(t) || softmax(s) )
# (mean over tokens is applied in the wrapper with the true row count)
# ---------------------------------------------------------------------------
def kl_sum(logits_s, logits_t):
    """Returns (sum over tokens of KL(p_t || p_s), true token count)."""
    V = logits_s.shape[-1]
    R = logits_s.size // V
    s2 = logits_s.reshape(R, V)
    t2 = logits_t.reshape(R, V)
    row_tile = _row_tile_for(V, R)
    n_outer, n_inner = _grid_for(R, row_tile)
    need_mask = (n_outer * n_inner * row_tile) != R

    def kernel(s_ref, t_ref, o_ref):
        i = pl.program_id(0)
        j = pl.program_id(1)

        @pl.when(j == 0)
        def _():
            o_ref[...] = jnp.zeros_like(o_ref)

        s = s_ref[...].astype(jnp.float32)                     # (rows, V)
        t = t_ref[...].astype(jnp.float32)
        s_sh = s - jnp.max(s, axis=-1, keepdims=True)
        t_sh = t - jnp.max(t, axis=-1, keepdims=True)
        exp_s = jnp.exp(s_sh)
        exp_t = jnp.exp(t_sh)
        sum_s = jnp.sum(exp_s, axis=-1, keepdims=True)
        sum_t = jnp.sum(exp_t, axis=-1, keepdims=True)
        cross = jnp.sum(exp_t * (t_sh - s_sh), axis=-1, keepdims=True)
        # KL(p_t || p_s) per row without materializing log_p / log_q / p;
        # the normalization divide is one exact per-row op.
        kl = cross / sum_t + jnp.log(sum_s) - jnp.log(sum_t)   # (rows, 1)
        if need_mask:
            row0 = (i * n_inner + j) * row_tile
            rid = row0 + lax.broadcasted_iota(jnp.int32, kl.shape, 0)
            kl = jnp.where(rid < R, kl, 0.0)
        o_ref[...] += jnp.sum(kl)

    out = pl.pallas_call(
        kernel,
        out_shape=jax.ShapeDtypeStruct((n_outer * 8, 128), jnp.float32),
        grid_spec=pltpu.PrefetchScalarGridSpec(
            num_scalar_prefetch=0,
            grid=(n_outer, n_inner),
            in_specs=[
                pl.BlockSpec((row_tile, V), lambda i, j: (i * n_inner + j, 0)),
                pl.BlockSpec((row_tile, V), lambda i, j: (i * n_inner + j, 0)),
            ],
            out_specs=pl.BlockSpec((8, 128), lambda i, j: (i, 0)),
        ),
        compiler_params=pltpu.CompilerParams(
            dimension_semantics=("parallel", "arbitrary"),
            vmem_limit_bytes=_VMEM_LIMIT),
        cost_estimate=pl.CostEstimate(
            flops=int(8 * R * V),
            transcendentals=int(2 * R * V),
            bytes_accessed=int(R * V * (s2.dtype.itemsize + t2.dtype.itemsize))),
    )(s2, t2)
    return _partial_sums(out, n_outer), R


# ---------------------------------------------------------------------------
# Kernel 2: hidden-state SSE per layer:  sum (LN(rows_s @ W) - LN(rows_t))^2
# ---------------------------------------------------------------------------
def hs_sse(feat_s, feat_t, w_proj):
    # feat_s: (B, S, Hs), feat_t: (B, S, Ht). LayerNorm is per (b, s) row over the hidden
    # dim, so flatten to (B*S, H) rows (free reshape) and tile the row axis.
    B, S, Hs = feat_s.shape
    Ht = feat_t.shape[-1]
    R = B * S
    s2 = feat_s.reshape(R, Hs)
    t2 = feat_t.reshape(R, Ht)
    row_tile = _row_tile_for(max(Hs, Ht), R)
    n_outer, n_inner = _grid_for(R, row_tile)
    need_mask = (n_outer * n_inner * row_tile) != R

    def kernel(s_ref, t_ref, w_hbm, o_ref, w_vmem):
        i = pl.program_id(0)
        j = pl.program_id(1)

        @pl.when(j == 0)
        def _():
            o_ref[...] = jnp.zeros_like(o_ref)
            # Single-buffered projector weight: one VMEM copy, fetched once per outer
            # chunk (the BlockSpec pipeline would keep two resident copies of (Hs, Ht)).
            pltpu.sync_copy(w_hbm, w_vmem)

        # Native-dtype matmul: bf16 activations/weight hit the MXU fast path; acc in f32.
        proj = jnp.dot(s_ref[...], w_vmem[...], preferred_element_type=jnp.float32)
        t = t_ref[...].astype(jnp.float32)

        def _layernorm(x):
            mu = jnp.mean(x, axis=-1, keepdims=True)
            var = jnp.mean((x - mu) ** 2, axis=-1, keepdims=True)
            return (x - mu) * lax.rsqrt(var + 1e-5)

        d = _layernorm(proj) - _layernorm(t)
        sq = jnp.sum(d * d, axis=-1, keepdims=True)            # (rows, 1)
        if need_mask:
            row0 = (i * n_inner + j) * row_tile
            rid = row0 + lax.broadcasted_iota(jnp.int32, sq.shape, 0)
            sq = jnp.where(rid < R, sq, 0.0)
        o_ref[...] += jnp.sum(sq)

    out = pl.pallas_call(
        kernel,
        out_shape=jax.ShapeDtypeStruct((n_outer * 8, 128), jnp.float32),
        grid_spec=pltpu.PrefetchScalarGridSpec(
            num_scalar_prefetch=0,
            grid=(n_outer, n_inner),
            in_specs=[
                pl.BlockSpec((row_tile, Hs), lambda i, j: (i * n_inner + j, 0)),
                pl.BlockSpec((row_tile, Ht), lambda i, j: (i * n_inner + j, 0)),
                pl.BlockSpec(memory_space=pl.ANY),   # weight stays in HBM; manual copy
            ],
            out_specs=pl.BlockSpec((8, 128), lambda i, j: (i, 0)),
            scratch_shapes=[pltpu.VMEM((Hs, Ht), w_proj.dtype)],
        ),
        compiler_params=pltpu.CompilerParams(
            dimension_semantics=("parallel", "arbitrary"),
            vmem_limit_bytes=_VMEM_LIMIT),
        cost_estimate=pl.CostEstimate(
            flops=int(2 * R * Hs * Ht + 14 * R * Ht),
            transcendentals=int(2 * R),
            bytes_accessed=int((R * (Hs + Ht) + Hs * Ht) * feat_s.dtype.itemsize)),
    )(s2, t2, w_proj)
    return _partial_sums(out, n_outer)


# ---------------------------------------------------------------------------
# Kernel 3: attention SSE per layer:  sum (attn_s - attn_t)^2
# ---------------------------------------------------------------------------
def attn_sse(feat_s, feat_t):
    # Pure elementwise MSE: flatten the contiguous (B, Hd, S, S) tensor to a lane-dense
    # (rows, width) view (width up to 4096) so DMAs and stores stay full-width.
    s2 = _lane_dense_2d(feat_s)
    t2 = _lane_dense_2d(feat_t)
    R, W = s2.shape
    row_tile = _row_tile_for(W, R)
    n_outer, n_inner = _grid_for(R, row_tile)
    need_mask = (n_outer * n_inner * row_tile) != R

    def kernel(s_ref, t_ref, o_ref):
        i = pl.program_id(0)
        j = pl.program_id(1)

        @pl.when(j == 0)
        def _():
            o_ref[...] = jnp.zeros_like(o_ref)

        d = s_ref[...].astype(jnp.float32) - t_ref[...].astype(jnp.float32)
        sq = jnp.sum(d * d, axis=-1, keepdims=True)             # (rows, 1)
        if need_mask:
            row0 = (i * n_inner + j) * row_tile
            rid = row0 + lax.broadcasted_iota(jnp.int32, sq.shape, 0)
            sq = jnp.where(rid < R, sq, 0.0)
        o_ref[...] += jnp.sum(sq)

    out = pl.pallas_call(
        kernel,
        out_shape=jax.ShapeDtypeStruct((n_outer * 8, 128), jnp.float32),
        grid_spec=pltpu.PrefetchScalarGridSpec(
            num_scalar_prefetch=0,
            grid=(n_outer, n_inner),
            in_specs=[
                pl.BlockSpec((row_tile, W), lambda i, j: (i * n_inner + j, 0)),
                pl.BlockSpec((row_tile, W), lambda i, j: (i * n_inner + j, 0)),
            ],
            out_specs=pl.BlockSpec((8, 128), lambda i, j: (i, 0)),
        ),
        compiler_params=pltpu.CompilerParams(
            dimension_semantics=("parallel", "arbitrary"),
            vmem_limit_bytes=_VMEM_LIMIT),
        cost_estimate=pl.CostEstimate(
            flops=int(3 * R * W),
            transcendentals=0,
            bytes_accessed=int(R * W * (s2.dtype.itemsize + t2.dtype.itemsize))),
    )(s2, t2)
    return _partial_sums(out, n_outer)


# ---------------------------------------------------------------------------
# DistillationObjective wrapper (glue in plain JAX).
# The vstack in LazyDistillationLoss only feeds a mean-reduction, so it is replaced by a
# per-layer loop of partial sums (no HBM concatenation of the features).
# ---------------------------------------------------------------------------
def distillation_objective(out_s, out_t, w_proj,
                           logits_weight=1.0, hs_weight=1.0, attn_weight=1.0):
    kl_total, n_tokens = kl_sum(out_s["logits"], out_t["logits"])
    loss_logits = logits_weight * (kl_total / jnp.float32(n_tokens))

    hs_total = jnp.float32(0.0)
    hs_count = 0
    for fs, ft in zip(out_s["hidden_states"], out_t["hidden_states"]):
        hs_total = hs_total + hs_sse(fs, ft, w_proj)
        hs_count += fs.shape[0] * fs.shape[1] * ft.shape[-1]
    loss_hs = hs_weight * (hs_total / jnp.float32(hs_count))

    at_total = jnp.float32(0.0)
    at_count = 0
    for fs, ft in zip(out_s["attentions"], out_t["attentions"]):
        at_total = at_total + attn_sse(fs, ft)
        at_count += fs.size
    loss_attn = attn_weight * (at_total / jnp.float32(at_count))

    loss = loss_logits + loss_hs + loss_attn
    return {"loss": loss, "loss/logits": loss_logits,
            "loss/hs": loss_hs, "loss/attn": loss_attn}


# ---------------------------------------------------------------------------
# Pure-JAX reference (for self-check).
# ---------------------------------------------------------------------------
def _reference(out_s, out_t, w_proj):
    f32 = lambda x: x.astype(jnp.float32)

    def _ln(x):
        mu = jnp.mean(x, axis=-1, keepdims=True)
        var = jnp.mean((x - mu) ** 2, axis=-1, keepdims=True)
        return (x - mu) * lax.rsqrt(var + 1e-5)

    log_q = jax.nn.log_softmax(f32(out_s["logits"]), axis=-1)
    log_p = jax.nn.log_softmax(f32(out_t["logits"]), axis=-1)
    p = jnp.exp(log_p)
    l_logits = jnp.mean(jnp.sum(p * (log_p - log_q), axis=-1))

    hs_s = jnp.concatenate([f32(h) for h in out_s["hidden_states"]], axis=0)
    hs_t = jnp.concatenate([f32(h) for h in out_t["hidden_states"]], axis=0)
    proj = jnp.einsum("nsh,hk->nsk", hs_s, f32(w_proj))
    l_hs = jnp.mean((_ln(proj) - _ln(hs_t)) ** 2)

    at_s = jnp.concatenate([f32(a) for a in out_s["attentions"]], axis=0)
    at_t = jnp.concatenate([f32(a) for a in out_t["attentions"]], axis=0)
    l_attn = jnp.mean((at_s - at_t) ** 2)
    return {"loss": l_logits + l_hs + l_attn, "loss/logits": l_logits,
            "loss/hs": l_hs, "loss/attn": l_attn}


if __name__ == "__main__":
    # Small synthetic model outputs (teacher & student), deterministic.
    B, S, V, H, Hd, L = 2, 8, 32, 32, 4, 2   # batch, seq, vocab, hidden, heads, layers
    key = jax.random.PRNGKey(0)
    ks = jax.random.split(key, 8)

    def softmax_attn(k):
        a = jax.random.normal(k, (B, Hd, S, S), jnp.float32)
        return jax.nn.softmax(a, axis=-1)

    def bf16_hidden(k, i):
        return jax.random.normal(jax.random.fold_in(k, i), (B, S, H),
                                 jnp.float32).astype(jnp.bfloat16)

    out_s = {
        "logits": jax.random.normal(ks[0], (B, S, V), jnp.float32),
        "hidden_states": tuple(bf16_hidden(ks[1], i) for i in range(L + 1)),
        "attentions": tuple(softmax_attn(jax.random.fold_in(ks[2], i)) for i in range(L)),
    }
    out_t = {
        "logits": jax.random.normal(ks[3], (B, S, V), jnp.float32),
        "hidden_states": tuple(bf16_hidden(ks[4], i) for i in range(L + 1)),
        "attentions": tuple(softmax_attn(jax.random.fold_in(ks[5], i)) for i in range(L)),
    }

    # Lazy projector parameter (student hidden -> teacher hidden), deterministic init,
    # stored in bf16 so the hs matmul uses the MXU bf16 fast path.
    w_proj = (0.02 * jax.random.normal(ks[6], (H, H), jnp.float32)).astype(jnp.bfloat16)

    losses = distillation_objective(out_s, out_t, w_proj)
    losses = jax.block_until_ready(losses)

    ref = _reference(out_s, out_t, w_proj)
    for name in ("loss/logits", "loss/hs", "loss/attn"):
        assert jnp.allclose(losses[name], ref[name], rtol=2e-2, atol=1e-5), (
            name, losses[name], ref[name])
    assert jnp.allclose(losses["loss"], ref["loss"], rtol=2e-2, atol=1e-4), (
        losses["loss"], ref["loss"])
    assert jnp.isfinite(losses["loss"])

    print("KERNEL_OK")
</pallas_src>

<mosaic_0001>
module attributes {stable_mosaic.version = 11 : i64} {
  func.func @kernel(%arg0: i32, %arg1: i32, %arg2: memref<16x32xf32, #tpu.memory_space<vmem>>, %arg3: memref<16x32xf32, #tpu.memory_space<vmem>>, %arg4: memref<8x128xf32, #tpu.memory_space<vmem>>) attributes {dimension_semantics = [#tpu.dimension_semantics<parallel>, #tpu.dimension_semantics<arbitrary>], iteration_bounds = array<i64: 1, 1>, scalar_prefetch = 0 : i64, scratch_operands = 0 : i64, tpu.core_type = #tpu.core_type<tc>, window_params = [{transform_indices = @transform_0, window_bounds = array<i64: 16, 32>}, {transform_indices = @transform_1, window_bounds = array<i64: 16, 32>}, {transform_indices = @transform_2, window_bounds = array<i64: 8, 128>}]} {
    %c0_i32 = arith.constant 0 : i32
    %0 = arith.cmpi eq, %arg1, %c0_i32 : i32
    %1 = arith.extui %0 : i1 to i32
    %c0_i32_0 = arith.constant 0 : i32
    %2 = arith.cmpi ne, %1, %c0_i32_0 : i32
    scf.if %2 {
      %cst_13 = arith.constant 0.000000e+00 : f32
      %36 = vector.broadcast %cst_13 : f32 to vector<8x128xf32>
      %c0_14 = arith.constant 0 : index
      %c0_15 = arith.constant 0 : index
      %37 = vector.load %arg4[%c0_14, %c0_15] : memref<8x128xf32, #tpu.memory_space<vmem>>, vector<8x128xf32>
      tpu.vector_store %arg4[%c0_14, %c0_15], %36 {strides = array<i32>} : memref<8x128xf32, #tpu.memory_space<vmem>>, vector<8x128xf32>,
    } else {
    }
    %c0 = arith.constant 0 : index
    %c0_1 = arith.constant 0 : index
    %3 = vector.load %arg2[%c0, %c0_1] : memref<16x32xf32, #tpu.memory_space<vmem>>, vector<16x32xf32>
    %c0_2 = arith.constant 0 : index
    %c0_3 = arith.constant 0 : index
    %4 = vector.load %arg3[%c0_2, %c0_3] : memref<16x32xf32, #tpu.memory_space<vmem>>, vector<16x32xf32>
    %cst = arith.constant dense<0xFF800000> : vector<16xf32>
    %5 = vector.multi_reduction <maximumf>, %3, %cst [1] : vector<16x32xf32> to vector<16xf32>
    %6 = vector.shape_cast %5 : vector<16xf32> to vector<16x1xf32>
    %7 = vector.broadcast %6 : vector<16x1xf32> to vector<16x32xf32>
    %8 = arith.subf %3, %7 : vector<16x32xf32>
    %cst_4 = arith.constant dense<0xFF800000> : vector<16xf32>
    %9 = vector.multi_reduction <maximumf>, %4, %cst_4 [1] : vector<16x32xf32> to vector<16xf32>
    %10 = vector.shape_cast %9 : vector<16xf32> to vector<16x1xf32>
    %11 = vector.broadcast %10 : vector<16x1xf32> to vector<16x32xf32>
    %12 = arith.subf %4, %11 : vector<16x32xf32>
    %13 = math.exp %8 : vector<16x32xf32>
    %14 = math.exp %12 : vector<16x32xf32>
    %cst_5 = arith.constant dense<0.000000e+00> : vector<16xf32>
    %15 = vector.multi_reduction <add>, %13, %cst_5 [1] : vector<16x32xf32> to vector<16xf32>
    %16 = vector.shape_cast %15 : vector<16xf32> to vector<16x1xf32>
    %cst_6 = arith.constant dense<0.000000e+00> : vector<16xf32>
    %17 = vector.multi_reduction <add>, %14, %cst_6 [1] : vector<16x32xf32> to vector<16xf32>
    %18 = vector.shape_cast %17 : vector<16xf32> to vector<16x1xf32>
    %19 = arith.subf %12, %8 : vector<16x32xf32>
    %20 = arith.mulf %14, %19 : vector<16x32xf32>
    %cst_7 = arith.constant dense<0.000000e+00> : vector<16xf32>
    %21 = vector.multi_reduction <add>, %20, %cst_7 [1] : vector<16x32xf32> to vector<16xf32>
    %22 = vector.shape_cast %21 : vector<16xf32> to vector<16x1xf32>
    %23 = arith.divf %22, %18 : vector<16x1xf32>
    %24 = math.log %16 : vector<16x1xf32>
    %25 = arith.addf %23, %24 : vector<16x1xf32>
    %26 = math.log %18 : vector<16x1xf32>
    %27 = arith.subf %25, %26 : vector<16x1xf32>
    %c0_8 = arith.constant 0 : index
    %c0_9 = arith.constant 0 : index
    %28 = vector.load %arg4[%c0_8, %c0_9] : memref<8x128xf32, #tpu.memory_space<vmem>>, vector<8x128xf32>
    %29 = vector.shape_cast %27 : vector<16x1xf32> to vector<1x16x1xf32>
    %cst_10 = arith.constant dense<0.000000e+00> : vector<1xf32>
    %30 = vector.multi_reduction <add>, %29, %cst_10 [1, 2] : vector<1x16x1xf32> to vector<1xf32>
    %31 = vector.shape_cast %30 : vector<1xf32> to vector<1x1x1xf32>
    %32 = vector.extract %31[0, 0, 0] : f32 from vector<1x1x1xf32>
    %33 = vector.broadcast %32 : f32 to vector<8x128xf32>
    %34 = arith.addf %28, %33 : vector<8x128xf32>
    %c0_11 = arith.constant 0 : index
    %c0_12 = arith.constant 0 : index
    %35 = vector.load %arg4[%c0_11, %c0_12] : memref<8x128xf32, #tpu.memory_space<vmem>>, vector<8x128xf32>
    tpu.vector_store %arg4[%c0_11, %c0_12], %34 {strides = array<i32>} : memref<8x128xf32, #tpu.memory_space<vmem>>, vector<8x128xf32>,
    return
  }
  func.func @transform_0(%arg0: i32, %arg1: i32) -> (i32, i32) {
    %c1_i32 = arith.constant 1 : i32
    %0 = arith.muli %arg0, %c1_i32 : i32
    %1 = arith.addi %0, %arg1 : i32
    %c0_i32 = arith.constant 0 : i32
    %c0_i32_0 = arith.constant 0 : i32
    return %1, %c0_i32 : i32, i32
  }
  func.func @transform_1(%arg0: i32, %arg1: i32) -> (i32, i32) {
    %c1_i32 = arith.constant 1 : i32
    %0 = arith.muli %arg0, %c1_i32 : i32
    %1 = arith.addi %0, %arg1 : i32
    %c0_i32 = arith.constant 0 : i32
    %c0_i32_0 = arith.constant 0 : i32
    return %1, %c0_i32 : i32, i32
  }
  func.func @transform_2(%arg0: i32, %arg1: i32) -> (i32, i32) {
    %c0_i32 = arith.constant 0 : i32
    %c0_i32_0 = arith.constant 0 : i32
    return %arg0, %c0_i32 : i32, i32
  }
}

</mosaic_0001>

<llo_original>
// kernel: tpu_custom_call.1
$region0: #{tpu_custom_call.1}
  #allocation0 [shape = 'u32[]', space=smem, size = 0x4, offset = 0x4, fixed_abs, tag = 'smem constant byte address 0x4 - core index']
  #allocation1 [shape = 'u32[144,128]{1,0:T(1,128)}', space=vmem, size = 0x12000, scoped, tag = 'internal scratch']
  %s0 = inlined_call_operand.hbm [shape: f32[16,32], index: 0, kind: input, shape index: {}]
  %s1 = inlined_call_operand.hbm [shape: f32[16,32], index: 1, kind: input, shape index: {}]
  %s2 = inlined_call_operand.hbm [shape: f32[8,128], index: 2, kind: output, shape index: {}]
  %s3 = sld [smem:[#allocation0]]
  $region30: #{tpu_custom_call.1} parent=0
    _
  %s5 = ssub.s32 1, %s3
  %s6 = scalar_select 0, %s5, %s3
  $region1: #{tpu_custom_call.1} parent=0
    #allocation2 [shape = 'u8[8192]{0}', space=vmem, size = 0x2000, scoped, tag = 'input window, operand 0, single buffered']
    #allocation3 [shape = 's32[1]{0}', space=sflag, size = 0x4, scoped, tag = 'scoped memory for tpu_custom_call.1']
    #allocation4 [shape = 's32[1]{0}', space=sflag, size = 0x4, scoped, tag = 'scoped memory for tpu_custom_call.1']
    #allocation5 [shape = 'u8[8192]{0}', space=vmem, size = 0x2000, scoped, tag = 'input window, operand 1, single buffered']
    #allocation6 [shape = 's32[1]{0}', space=sflag, size = 0x4, scoped, tag = 'scoped memory for tpu_custom_call.1']
    #allocation7 [shape = 'u8[4096]{0}', space=vmem, size = 0x1000, scoped, tag = 'output window, operand 0, single buffered']
    %7 = vsyncpa [#allocation3], 0
    %8 = vsyncpa [#allocation6], 0
    %9 = vsyncpa [#allocation4], 0
    // Predicated region
    $region2: #{tpu_custom_call.1} parent=1 // pred_check
      _
    $region3: #{tpu_custom_call.1} parent=1 // pred_check_branch
      %11 = sbr.rel (0) target = $region5
    $region4: #{tpu_custom_call.1} parent=1 // pred_region
      %s12 = sadd.s32 0, 0
      %s13 = smul.u32 2, %s12
      %s15 = ssub.s32 256, 256
      %16 = vsyncadd [#allocation3], %s15
      %s17 = smul.addr %s13, 128
      %s18 = scalar_lea.hbm %s0, %s17
      %s19 = sshll.u32 [#allocation2], 4
      %s20 = int_to_ptr.vmem [resolvable:$true] %s19
      %25 = dma.hbm_to_vmem [thread:$0]  %s18, 256, %s20, [#allocation3], 128, 128, 8
    $region5: #{tpu_custom_call.1} parent=1 // pred_fallthru
      _
    // Predicated region
    $region6: #{tpu_custom_call.1} parent=1 // pred_check
      _
    $region7: #{tpu_custom_call.1} parent=1 // pred_check_branch
      %27 = sbr.rel (0) target = $region9
    $region8: #{tpu_custom_call.1} parent=1 // pred_region
      %s28 = sadd.s32 0, 0
      %s29 = smul.u32 2, %s28
      %s31 = ssub.s32 256, 256
      %32 = vsyncadd [#allocation6], %s31
      %s33 = smul.addr %s29, 128
      %s34 = scalar_lea.hbm %s1, %s33
      %s35 = sshll.u32 [#allocation5], 4
      %s36 = int_to_ptr.vmem [resolvable:$true] %s35
      %41 = dma.hbm_to_vmem [thread:$0]  %s34, 256, %s36, [#allocation6], 128, 128, 8
    $region9: #{tpu_custom_call.1} parent=1 // pred_fallthru
      _
    // Predicated region
    $region10: #{tpu_custom_call.1} parent=1 // pred_check
      _
    $region11: #{tpu_custom_call.1} parent=1 // pred_check_branch
      %43 = sbr.rel (0) target = $region13
    $region12: #{tpu_custom_call.1} parent=1 // pred_region
      %44 = dma.done [#allocation3], 256
    $region13: #{tpu_custom_call.1} parent=1 // pred_fallthru
      _
    // Predicated region
    $region14: #{tpu_custom_call.1} parent=1 // pred_check
      _
    $region15: #{tpu_custom_call.1} parent=1 // pred_check_branch
      %46 = sbr.rel (0) target = $region17
    $region16: #{tpu_custom_call.1} parent=1 // pred_region
      %47 = dma.done [#allocation6], 256
    $region17: #{tpu_custom_call.1} parent=1 // pred_fallthru
      _
    %s48 = sadd.s32 0, 0
    %s49 = smul.u32 2, %s48
    %s50 = sadd.s32 0, 0
    %s51 = smul.u32 2, %s50
    %p52 = scmp.eq.s32.totalorder 0, 0
    // Predicated region
    $region18: #{tpu_custom_call.1} parent=1 // pred_check
      %p53 = pneg %p52
    $region19: #{tpu_custom_call.1} parent=1 // pred_check_branch
      %55 = sbr.rel (%p53) target = $region21
    $region20: #{tpu_custom_call.1} parent=1 // pred_region
      %56 = vst [vmem:[#allocation7] sm:$0xff] 0.0
    $region21: #{tpu_custom_call.1} parent=1 // pred_fallthru
      _
    %v57 = vld [vmem:[#allocation2] sm:$0xff]
    %v58 = vld [vmem:[#allocation2 + $0x8] sm:$0xff]
    %v59 = vld [vmem:[#allocation5] sm:$0xff]
    %v60 = vld [vmem:[#allocation5 + $0x8] sm:$0xff]
    %vm61 = vcmask 261120
    %v62 = vsel %vm61, %v57, -inf
    %63 = vmax.xlane.f32.xlu0 %v62
    %v64 = vpop.xlane.xlu0 %63
    %v65 = vsel %vm61, %v58, -inf
    %66 = vmax.xlane.f32.xlu0 %v65
    %v67 = vpop.xlane.xlu0 %66
    %v68 = vsub.f32 %v57, %v64
    %v69 = vsub.f32 %v58, %v67
    %v70 = vsel %vm61, %v59, -inf
    %71 = vmax.xlane.f32.xlu0 %v70
    %v72 = vpop.xlane.xlu0 %71
    %v73 = vsel %vm61, %v60, -inf
    %74 = vmax.xlane.f32.xlu0 %v73
    %v75 = vpop.xlane.xlu0 %74
    %v76 = vsub.f32 %v59, %v72
    %v77 = vsub.f32 %v60, %v75
    %v78 = vmul.f32 %v68, 1.442695
    %v79 = vpow.pop %v78
    %v80 = vmul.f32 %v69, 1.442695
    %v81 = vpow.pop %v80
    %v82 = vmul.f32 %v76, 1.442695
    %v83 = vpow.pop %v82
    %v84 = vmul.f32 %v77, 1.442695
    %v85 = vpow.pop %v84
    %v86 = vsel %vm61, %v79, 0.0
    %87 = vadd.xlane.f32.xlu0 %v86
    %v88 = vpop.xlane.xlu0 %87
    %v89 = vsel %vm61, %v81, 0.0
    %90 = vadd.xlane.f32.xlu0 %v89
    %v91 = vpop.xlane.xlu0 %90
    %v92 = vsel %vm61, %v83, 0.0
    %93 = vadd.xlane.f32.xlu0 %v92
    %v94 = vpop.xlane.xlu0 %93
    %v95 = vsel %vm61, %v85, 0.0
    %96 = vadd.xlane.f32.xlu0 %v95
    %v97 = vpop.xlane.xlu0 %96
    %v98 = vsub.f32 %v76, %v68
    %v99 = vsub.f32 %v77, %v69
    %v100 = vmul.f32 %v83, %v98
    %v101 = vmul.f32 %v85, %v99
    %v102 = vsel %vm61, %v100, 0.0
    %103 = vadd.xlane.f32.xlu0 %v102
    %v104 = vpop.xlane.xlu0 %103
    %v105 = vsel %vm61, %v101, 0.0
    %106 = vadd.xlane.f32.xlu0 %v105
    %v107 = vpop.xlane.xlu0 %106
    %v108 = vrcp.pop %v94
    %v109 = vmul.f32 %v104, %v108
    %v110 = vrcp.pop %v97
    %v111 = vmul.f32 %v107, %v110
    %v112 = vlog2.pop %v88
    %v113 = vmul.f32 %v112, 0.6931472
    %v114 = vlog2.pop %v91
    %v115 = vmul.f32 %v114, 0.6931472
    %v116 = vadd.f32 %v109, %v113
    %v117 = vadd.f32 %v111, %v115
    %v118 = vlog2.pop %v94
    %v119 = vmul.f32 %v118, 0.6931472
    %v120 = vlog2.pop %v97
    %v121 = vmul.f32 %v120, 0.6931472
    %v122 = vsub.f32 %v116, %v119
    %v123 = vsub.f32 %v117, %v121
    %v124 = vld [vmem:[#allocation7] sm:$0xff]
    %vm125 = vcmask 7168
    %v126 = vsel %vm125, %v122, 0.0
    %v127 = vsel %vm125, %v123, 0.0
    %v128 = vadd.f32 %v126, %v127
    %129 = vadd.xlane.f32.xlu0 %v128
    %v130 = vpop.xlane.xlu0 %129
    %v131 = vrot.slane %v130, 4
    %v132 = vadd.f32 %v130, %v131
    %v133 = vrot.slane %v132, 2
    %v134 = vadd.f32 %v132, %v133
    %v135 = vrot.slane %v134, 1
    %v136 = vadd.f32 %v134, %v135
    %s137 = vtos %v136
    %v138 = vstv %s137
    %v139 = vadd.f32 %v124, %v138
    %140 = vst [vmem:[#allocation7] sm:$0xff] %v139
    // Predicated region
    $region22: #{tpu_custom_call.1} parent=1 // pred_check
      _
    $region23: #{tpu_custom_call.1} parent=1 // pred_check_branch
      %142 = sbr.rel (0) target = $region25
    $region24: #{tpu_custom_call.1} parent=1 // pred_region
      %s144 = ssub.s32 128, 128
      %145 = vsyncadd [#allocation4], %s144
      %s147 = sshll.u32 [#allocation7], 4
      %s148 = int_to_ptr.vmem [resolvable:$true] %s147
      %150 = dma.vmem_to_hbm [thread:$0]  %s148, 128, %s2, [#allocation4]
    $region25: #{tpu_custom_call.1} parent=1 // pred_fallthru
      _
    // Predicated region
    $region26: #{tpu_custom_call.1} parent=1 // pred_check
      _
    $region27: #{tpu_custom_call.1} parent=1 // pred_check_branch
      %152 = sbr.rel (0) target = $region29
    $region28: #{tpu_custom_call.1} parent=1 // pred_region
      %153 = dma.done [#allocation4], 128
    $region29: #{tpu_custom_call.1} parent=1 // pred_fallthru
      _
    %154 = vsyncpa [#allocation3], 1
    %155 = vsyncpa [#allocation6], 1
    %156 = vsyncpa [#allocation4], 1

</llo_original>
